<compile_context>
chip_gen: v5e
topology: v5e:2x2
jax: 0.10.0
libtpu: 0.0.40
codegen_flags: <defaults>
</compile_context>

<pallas_src>
import functools

import jax
import jax.numpy as jnp
from jax.experimental import pallas as pl
from jax.experimental.pallas import tpu as pltpu


def _projection_kernel(x_ref, t_ref, m_ref):
    # x: (tm, F) bf16, t: (F, B*C) bf16 -> m: (tm, B*C) f32 (MXU, f32 accumulation)
    m_ref[...] = jnp.dot(x_ref[...], t_ref[...], preferred_element_type=jnp.float32)


def _pairwise_kernel(m_j_ref, m_i_ref, w_ref, o_ref, *, tj, ti, tc, B, C):
    i_idx = pl.program_id(1)

    @pl.when(i_idx == 0)
    def _init():
        o_ref[...] = jnp.zeros_like(o_ref)

    BC = B * C
    m_j = m_j_ref[...]                                    # (tj, BC) f32, output rows

    # Block-diagonal 0/1 selector for the grouped sum over kernel_dims C, built
    # in-kernel (cheap, ~2 vregs) and hoisted out of the chunk loop; bf16 so the
    # MXU contraction runs at native rate (sel is exactly representable).
    sel = (jax.lax.broadcasted_iota(jnp.int32, (BC, B), 0) // C
           == jax.lax.broadcasted_iota(jnp.int32, (BC, B), 1)).astype(jnp.bfloat16)

    def chunk_body(c, acc):
        start = pl.multiple_of(c * tc, tc)
        m_i = m_i_ref[pl.ds(start, tc), :]                # (tc, BC) f32 reduction rows
        # abs-diff stays f32 (v5e has no bf16 VPU); cast only for the MXU feed.
        # TODO(synk): on v6e/v7x a bf16 diff (bf16 VALU) would halve this VPU work.
        diff = jnp.abs(m_i[:, None, :] - m_j[None, :, :]) # (tc, tj, BC)
        diff = diff.reshape(tc * tj, BC).astype(jnp.bfloat16)   # layout-free collapse
        norm = jnp.dot(diff, sel, preferred_element_type=jnp.float32)   # (tc*tj, B)
        e = jnp.exp(-norm)                                # f32 (EUP)
        # TODO(synk): norm/e/acc use only B of 128 lanes; a transposed (BC, N)
        # formulation would make this lane-dense and cut exp pushes ~8x.
        # Sum over reduction rows: splitting the sublane-major dim is layout-free,
        # so this is ~tc-1 vadds (replaces the old `red` selector matmul).
        return acc + e.reshape(tc, tj, B).sum(axis=0)

    acc = jax.lax.fori_loop(0, ti // tc, chunk_body,
                            jnp.zeros((tj, B), jnp.float32), unroll=True)
    o_ref[...] += acc

    @pl.when(i_idx == pl.num_programs(1) - 1)
    def _finalize():
        # Self term exp(0)=1 appears exactly once per output row -> the "-1".
        o_ref[...] = w_ref[...] * (o_ref[...] - 1.0)


def minibatch_discrimination(x, T, w, *, tile_j=None, tile_i=None, tile_m=None,
                             chunk_i=None):
    """x: (N, in_features); T: (in_features, out_features, kernel_dims); w: (1, N)."""
    N, F = x.shape
    Fi, B, C = T.shape
    assert Fi == F
    BC = B * C

    tj = tile_j if tile_j is not None else min(N, 128)    # parallel output-row tile
    ti = tile_i if tile_i is not None else min(N, 256)    # reduction rows per grid step
    tm = tile_m if tile_m is not None else min(N, 256)
    tc = chunk_i if chunk_i is not None else min(ti, 8)   # inner reduction chunk
    # TODO(synk): general N needs a masked remainder path; divisibility assumed.
    assert N % tj == 0 and N % ti == 0 and N % tm == 0 and ti % tc == 0

    # bf16 is the native MXU rate on v5e/v6e/v7x; accumulate in f32.
    x_bf16 = x.astype(jnp.bfloat16)
    t_flat = T.reshape(F, BC).astype(jnp.bfloat16)
    w_col = jnp.transpose(w.reshape(1, N)).astype(jnp.float32)          # (N, 1)

    # --- 1) m = x @ T.view(F, B*C), computed once (hoisted out of pairwise work).
    m = pl.pallas_call(
        _projection_kernel,
        out_shape=jax.ShapeDtypeStruct((N, BC), jnp.float32),
        grid=(N // tm,),
        in_specs=[
            pl.BlockSpec((tm, F), lambda r: (r, 0)),
            pl.BlockSpec((F, BC), lambda r: (0, 0)),
        ],
        out_specs=pl.BlockSpec((tm, BC), lambda r: (r, 0)),
        compiler_params=pltpu.CompilerParams(
            dimension_semantics=("parallel",),
            vmem_limit_bytes=32 * 1024 * 1024,
        ),
    )(x_bf16, t_flat)

    # --- 2) pairwise exp(-L1) reduction, tiled: j parallel (megacore), i reduction.
    # TODO(synk): when N*BC*4 fits VMEM, m could be kept fully resident (constant
    # index_map) or the projection fused in, removing the m_i HBM re-reads.
    kernel = functools.partial(_pairwise_kernel, tj=tj, ti=ti, tc=tc, B=B, C=C)
    return pl.pallas_call(
        kernel,
        out_shape=jax.ShapeDtypeStruct((N, B), jnp.float32),
        grid=(N // tj, N // ti),
        in_specs=[
            pl.BlockSpec((tj, BC), lambda j, i: (j, 0)),   # m rows for output tile j
            pl.BlockSpec((ti, BC), lambda j, i: (i, 0)),   # m rows being reduced over
            pl.BlockSpec((tj, 1), lambda j, i: (j, 0)),    # w column for tile j
        ],
        out_specs=pl.BlockSpec((tj, B), lambda j, i: (j, 0)),
        compiler_params=pltpu.CompilerParams(
            dimension_semantics=("parallel", "arbitrary"),
            vmem_limit_bytes=32 * 1024 * 1024,
        ),
    )(m, m, w_col)


def _reference(x, T, w):
    """Pure-JAX transcription of the PyTorch forward (same bf16 projection inputs)."""
    N, F = x.shape
    _, B, C = T.shape
    m = jnp.dot(x.astype(jnp.bfloat16), T.reshape(F, B * C).astype(jnp.bfloat16),
                preferred_element_type=jnp.float32).reshape(N, B, C)
    norm = jnp.abs(m[None, :, :, :] - m[:, None, :, :]).sum(3)     # (N, N, B)
    expnorm = jnp.exp(-norm)
    o_b = (w.reshape(1, N, 1) * expnorm).sum(0)                    # (N, B)
    return o_b - w.reshape(N, 1)


if __name__ == "__main__":
    # batch N=32, in_features=32, out_features=16, kernel_dims=8 (B*C = 128 lanes).
    # tile_j=8, tile_i=16, chunk_i=8 -> pairwise grid (4, 2) with 2 inner chunks:
    # exercises the parallel j axis, the i-axis accumulator init/finalize, and the
    # unrolled inner chunk loop even at this small size.
    N, F, B, C = 32, 32, 16, 8
    key = jax.random.PRNGKey(0)
    kx, kt, kw = jax.random.split(key, 3)

    # scale x so pairwise L1 norms are O(1) and the check is numerically meaningful
    x = 0.05 * jax.random.normal(kx, (N, F), dtype=jnp.float32)
    T = jax.random.normal(kt, (F, B, C), dtype=jnp.float32)   # nn.init.normal(T, 0, 1)
    w = jax.random.uniform(kw, (1, N), dtype=jnp.float32)

    out = jax.block_until_ready(
        minibatch_discrimination(x, T, w, tile_j=8, tile_i=16, tile_m=16, chunk_i=8))
    ref = _reference(x, T, w)

    assert out.shape == (N, B)
    assert jnp.allclose(out, ref, atol=5e-3, rtol=2e-2), "mismatch vs reference"
    print("KERNEL_OK")
</pallas_src>

<mosaic_0001>
module attributes {stable_mosaic.version = 11 : i64} {
  func.func @_projection_kernel(%arg0: i32, %arg1: memref<16x32xbf16, #tpu.memory_space<vmem>>, %arg2: memref<32x128xbf16, #tpu.memory_space<vmem>>, %arg3: memref<16x128xf32, #tpu.memory_space<vmem>>) attributes {dimension_semantics = [#tpu.dimension_semantics<parallel>], iteration_bounds = array<i64: 2>, scalar_prefetch = 0 : i64, scratch_operands = 0 : i64, tpu.core_type = #tpu.core_type<tc>, window_params = [{transform_indices = @transform_0, window_bounds = array<i64: 16, 32>}, {pipeline_mode = #tpu.pipeline_mode<synchronous>, transform_indices = @transform_1, window_bounds = array<i64: 32, 128>}, {transform_indices = @transform_2, window_bounds = array<i64: 16, 128>}]} {
    %c0 = arith.constant 0 : index
    %c0_0 = arith.constant 0 : index
    %0 = vector.load %arg1[%c0, %c0_0] : memref<16x32xbf16, #tpu.memory_space<vmem>>, vector<16x32xbf16>
    %c0_1 = arith.constant 0 : index
    %c0_2 = arith.constant 0 : index
    %1 = vector.load %arg2[%c0_1, %c0_2] : memref<32x128xbf16, #tpu.memory_space<vmem>>, vector<32x128xbf16>
    %cst = arith.constant dense<0.000000e+00> : vector<16x128xf32>
    %2 = tpu.matmul %0, %1, %cst {dimension_numbers = #tpu.dot_dimension_numbers<[1], [0], [0], [1], [0, 0, 1, 1], [], []>} : vector<16x32xbf16>, vector<32x128xbf16>, vector<16x128xf32> -> vector<16x128xf32>
    %c0_3 = arith.constant 0 : index
    %c0_4 = arith.constant 0 : index
    %3 = vector.load %arg3[%c0_3, %c0_4] : memref<16x128xf32, #tpu.memory_space<vmem>>, vector<16x128xf32>
    tpu.vector_store %arg3[%c0_3, %c0_4], %2 {strides = array<i32>} : memref<16x128xf32, #tpu.memory_space<vmem>>, vector<16x128xf32>,
    return
  }
  func.func @transform_0(%arg0: i32) -> (i32, i32) {
    %c0_i32 = arith.constant 0 : i32
    %c0_i32_0 = arith.constant 0 : i32
    return %arg0, %c0_i32 : i32, i32
  }
  func.func @transform_1(%arg0: i32) -> (i32, i32) {
    %c0_i32 = arith.constant 0 : i32
    %c0_i32_0 = arith.constant 0 : i32
    %c0_i32_1 = arith.constant 0 : i32
    return %c0_i32, %c0_i32_0 : i32, i32
  }
  func.func @transform_2(%arg0: i32) -> (i32, i32) {
    %c0_i32 = arith.constant 0 : i32
    %c0_i32_0 = arith.constant 0 : i32
    return %arg0, %c0_i32 : i32, i32
  }
}

</mosaic_0001>

<llo_original>
// kernel: tpu_custom_call.1
$region0: #{tpu_custom_call.1}
  #allocation0 [shape = 'u32[]', space=smem, size = 0x4, offset = 0x4, fixed_abs, tag = 'smem constant byte address 0x4 - core index']
  #allocation1 [shape = 'u32[72,128]{1,0:T(1,128)}', space=vmem, size = 0x9000, scoped, tag = 'internal scratch']
  %s0 = inlined_call_operand.hbm [shape: bf16[32,32], index: 0, kind: input, shape index: {}]
  %s1 = inlined_call_operand.hbm [shape: bf16[32,128], index: 1, kind: input, shape index: {}]
  %s2 = inlined_call_operand.hbm [shape: f32[32,128], index: 2, kind: output, shape index: {}]
  %s3 = sld [smem:[#allocation0]]
  $region49: #{tpu_custom_call.1} parent=0
    _
  %s5 = ssub.s32 1, %s3
  %s6 = scalar_select 0, %s5, %s3
  $region1: #{tpu_custom_call.1} parent=0
    #allocation2 [shape = 'u8[8192]{0}', space=vmem, size = 0x2000, scoped, tag = 'input window, operand 0']
    #allocation3 [shape = 's32[2]{0}', space=sflag, size = 0x8, scoped, tag = 'scoped memory for tpu_custom_call.1']
    #allocation4 [shape = 's32[2]{0}', space=sflag, size = 0x8, scoped, tag = 'scoped memory for tpu_custom_call.1']
    #allocation5 [shape = 'u8[8192]{0}', space=vmem, size = 0x2000, scoped, tag = 'input window, operand 1, single buffered']
    #allocation6 [shape = 's32[1]{0}', space=sflag, size = 0x4, scoped, tag = 'scoped memory for tpu_custom_call.1']
    #allocation7 [shape = 'u8[16384]{0}', space=vmem, size = 0x4000, scoped, tag = 'output window, operand 0']
    %7 = vsyncpa [#allocation3], 0
    %s8 = scalar_lea.sflag [#allocation3], 1
    %9 = vsyncpa %s8, 0
    %10 = vsyncpa [#allocation6], 0
    %11 = vsyncpa [#allocation4], 0
    %s12 = scalar_lea.sflag [#allocation4], 1
    %13 = vsyncpa %s12, 0
    loop: start=0, step=1, limit=4
    $region2: #{tpu_custom_call.1} parent=1 // loop_pre_header
      _
    $region3: #{tpu_custom_call.1} parent=1 // loop_header
      %s15 = sphi 0, %s19
      %p16 = scmp.ge.s32.totalorder %s15, 4
      %s25 = sphi 0, %s27
      %s28 = sphi 0, %s25
      %s29 = sphi 0, %s28
      %s45 = sphi 0, %s29
      %s49 = sphi 0, %s49
      %s51 = sphi 0, %s49
      %s52 = sphi 0, %s51
      %s66 = sphi 0, %s52
      %s72 = sphi 0, %s74
      %s75 = sphi 0, %s72
      %s76 = sphi 0, %s75
      %s92 = sphi 0, %s76
    $region4: #{tpu_custom_call.1} parent=1 // loop_header_branch
      %18 = sbr.rel (%p16) target = $region8
    $region5: #{tpu_custom_call.1} parent=1 // loop_body
      %s20 = ssub.s32 %s15, 1
      %s21 = ssub.s32 %s15, 2
      %s22 = sadd.s32 %s15, 1
      %s23 = ssub.s32 %s15, %s22
      %p24 = scmp.eq.s32.totalorder %s23, 0
      %s26 = sadd.s32 %s25, 1
      %s27 = scalar_select %p24, %s25, %s26
      %p30 = pneg %p24
      %p31 = scmp.eq.s32.totalorder %s15, 1
      %p32 = por %p30, %p31
      %p33 = scmp.ne.s32.totalorder %s25, %s28
      %p34 = scmp.eq.s32.totalorder %s15, 0
      %p35 = por %p33, %p34
      %p36 = scmp.ne.s32.totalorder %s25, %s28
      %p37 = scmp.eq.s32.totalorder %s20, 1
      %p38 = por %p36, %p37
      %p39 = scmp.ne.s32.totalorder %s28, %s29
      %p40 = scmp.eq.s32.totalorder %s20, 0
      %p41 = por %p39, %p40
      %p42 = scmp.ne.s32.totalorder %s28, %s29
      %p43 = scmp.eq.s32.totalorder %s21, 1
      %p44 = por %p42, %p43
      %p46 = scmp.ne.s32.totalorder %s29, %s45
      %p47 = scmp.eq.s32.totalorder %s21, 0
      %p48 = por %p46, %p47
      %s50 = sadd.s32 %s49, 1
      %p53 = scmp.eq.s32.totalorder %s15, 1
      %p54 = scmp.ne.s32.totalorder %s49, %s51
      %p55 = scmp.eq.s32.totalorder %s15, 0
      %p56 = por %p54, %p55
      %p57 = scmp.ne.s32.totalorder %s49, %s51
      %p58 = scmp.eq.s32.totalorder %s20, 1
      %p59 = por %p57, %p58
      %p60 = scmp.ne.s32.totalorder %s51, %s52
      %p61 = scmp.eq.s32.totalorder %s20, 0
      %p62 = por %p60, %p61
      %p63 = scmp.ne.s32.totalorder %s51, %s52
      %p64 = scmp.eq.s32.totalorder %s21, 1
      %p65 = por %p63, %p64
      %p67 = scmp.ne.s32.totalorder %s52, %s66
      %p68 = scmp.eq.s32.totalorder %s21, 0
      %p69 = por %p67, %p68
      %s70 = ssub.s32 %s15, %s22
      %p71 = scmp.eq.s32.totalorder %s70, 0
      %s73 = sadd.s32 %s72, 1
      %s74 = scalar_select %p71, %s72, %s73
      %p77 = pneg %p71
      %p78 = scmp.eq.s32.totalorder %s15, 1
      %p79 = por %p77, %p78
      %p80 = scmp.ne.s32.totalorder %s72, %s75
      %p81 = scmp.eq.s32.totalorder %s15, 0
      %p82 = por %p80, %p81
      %p83 = scmp.ne.s32.totalorder %s72, %s75
      %p84 = scmp.eq.s32.totalorder %s20, 1
      %p85 = por %p83, %p84
      %p86 = scmp.ne.s32.totalorder %s75, %s76
      %p87 = scmp.eq.s32.totalorder %s20, 0
      %p88 = por %p86, %p87
      %p89 = scmp.ne.s32.totalorder %s75, %s76
      %p90 = scmp.eq.s32.totalorder %s21, 1
      %p91 = por %p89, %p90
      %p93 = scmp.ne.s32.totalorder %s76, %s92
      %p94 = scmp.eq.s32.totalorder %s21, 0
      %p95 = por %p93, %p94
      %p96 = scmp.le.s32.totalorder 1, %s15
      %p97 = scmp.lt.s32.totalorder %s15, 3
      %p98 = pnand %p96, %p97
      %p99 = pneg %p98
      // Predicated region
      $region9: #{tpu_custom_call.1} parent=5 // pred_check
        _
      $region10: #{tpu_custom_call.1} parent=5 // pred_check_branch
        %101 = sbr.rel (%p98) target = $region12
      $region11: #{tpu_custom_call.1} parent=5 // pred_region
        %s102 = ssub.s32 %s15, 1
        // Predicated region
        $region13: #{tpu_custom_call.1} parent=11 // pred_check
          %p103 = pneg %p62
        $region14: #{tpu_custom_call.1} parent=11 // pred_check_branch
          %105 = sbr.rel (%p103) target = $region16
        $region15: #{tpu_custom_call.1} parent=11 // pred_region
          %107 = vsyncadd [#allocation6], 0
          %s108 = sshll.u32 %s1, 4
          %s109 = int_to_ptr.hbm [resolvable:$true] %s108
          %s110 = sshll.u32 [#allocation5], 4
          %s111 = int_to_ptr.vmem [resolvable:$true] %s110
          %116 = dma.hbm_to_vmem [thread:$0]  %s109, 256, %s111, [#allocation6], 64, 64, 4
        $region16: #{tpu_custom_call.1} parent=11 // pred_fallthru
          _
      $region12: #{tpu_custom_call.1} parent=5 // pred_fallthru
        _
      %p117 = scmp.lt.s32.totalorder %s15, 2
      // Predicated region
      $region17: #{tpu_custom_call.1} parent=5 // pred_check
        %p118 = pneg %p117
      $region18: #{tpu_custom_call.1} parent=5 // pred_check_branch
        %120 = sbr.rel (%p118) target = $region20
      $region19: #{tpu_custom_call.1} parent=5 // pred_region
        // Predicated region
        $region21: #{tpu_custom_call.1} parent=19 // pred_check
          %p121 = pneg %p35
        $region22: #{tpu_custom_call.1} parent=19 // pred_check_branch
          %123 = sbr.rel (%p121) target = $region24
        $region23: #{tpu_custom_call.1} parent=19 // pred_region
          %s124 = sand.u32 %s25, 1
          %s125 = scalar_lea.sflag [#allocation3], %s124
          %s126 = sand.u32 %s25, 1
          %s127 = smul.addr %s126, 8
          %s128 = scalar_lea.vmem [#allocation2], %s127
          %s129 = smul.u32 2, %s15
          %131 = vsyncadd %s125, 0
          %s132 = smul.addr %s129, 4
          %s133 = scalar_lea.hbm %s0, %s132
          %s134 = sshll.u32 %s133, 4
          %s135 = int_to_ptr.hbm [resolvable:$true] %s134
          %s136 = sshll.u32 %s128, 4
          %s137 = int_to_ptr.vmem [resolvable:$true] %s136
          %142 = dma.hbm_to_vmem [thread:$0]  %s135, 128, %s137, %s125, 64, 64, 4
        $region24: #{tpu_custom_call.1} parent=19 // pred_fallthru
          _
      $region20: #{tpu_custom_call.1} parent=5 // pred_fallthru
        _
      %p143 = scmp.le.s32.totalorder 1, %s15
      %p144 = scmp.lt.s32.totalorder %s15, 3
      %p145 = pnand %p143, %p144
      %p146 = pneg %p145
      // Predicated region
      $region25: #{tpu_custom_call.1} parent=5 // pred_check
        _
      $region26: #{tpu_custom_call.1} parent=5 // pred_check_branch
        %148 = sbr.rel (%p145) target = $region28
      $region27: #{tpu_custom_call.1} parent=5 // pred_region
        %s149 = ssub.s32 %s15, 1
        %s150 = sand.u32 %s28, 1
        %s151 = scalar_lea.sflag [#allocation3], %s150
        %s152 = sand.u32 %s28, 1
        %s153 = smul.addr %s152, 8
        %s154 = scalar_lea.vmem [#allocation2], %s153
        // Predicated region
        $region29: #{tpu_custom_call.1} parent=27 // pred_check
          %p155 = pneg %p41
        $region30: #{tpu_custom_call.1} parent=27 // pred_check_branch
          %157 = sbr.rel (%p155) target = $region32
        $region31: #{tpu_custom_call.1} parent=27 // pred_region
          %159 = dma.done %s151, 128
        $region32: #{tpu_custom_call.1} parent=27 // pred_fallthru
          _
        // Predicated region
        $region33: #{tpu_custom_call.1} parent=27 // pred_check
          %p160 = pneg %p62
        $region34: #{tpu_custom_call.1} parent=27 // pred_check_branch
          %162 = sbr.rel (%p160) target = $region36
        $region35: #{tpu_custom_call.1} parent=27 // pred_region
          %164 = dma.done [#allocation6], 256
        $region36: #{tpu_custom_call.1} parent=27 // pred_fallthru
          _
        %s165 = sand.u32 %s28, 1
        %s166 = scalar_lea.sflag [#allocation3], %s165
        %s167 = sand.u32 %s28, 1
        %s168 = smul.addr %s167, 8
        %s169 = scalar_lea.vmem [#allocation2], %s168
        %p170 = pneg %p41
        %p171 = pneg %p38
        %p172 = pneg %p62
        %p173 = pneg %p59
        %p174 = pneg %p88
        %p175 = pneg %p85
        %s176 = sand.u32 %s75, 1
        %s177 = scalar_lea.sflag [#allocation4], %s176
        %s178 = sand.u32 %s75, 1
        %s179 = smul.addr %s178, 16
        %s180 = scalar_lea.vmem [#allocation7], %s179
        %s181 = smul.u32 2, %s20
        %s182 = smul.u32 2, %s20
        %v184 = vld [vmem:[%s154] sm:$0xf]
        %v185 = vld [vmem:[%s154 + $0x4] sm:$0xf]
        %v186 = vld [vmem:[#allocation5] sm:$0xf]
        %v187 = vld [vmem:[#allocation5 + $0x4] sm:$0xf]
        %v188 = vld [vmem:[#allocation5 + $0x8] sm:$0xf]
        %v189 = vld [vmem:[#allocation5 + $0xc] sm:$0xf]
        %v192 = vunpack.c.l.b16 %v184
        %v193 = vunpack.c.l.b16 %v185
        %v194 = vpack.c.b16 %v193, %v192
        %v199 = vunpack.c.l.b16 %v186
        %v200 = vunpack.c.l.b16 %v187
        %v201 = vunpack.c.l.b16 %v188
        %v202 = vunpack.c.l.b16 %v189
        %v203 = vpack.c.b16 %v200, %v199
        %v204 = vpack.c.b16 %v202, %v201
        %vm207 = vcmask 261120
        %v209 = vsel %vm207, %v194, 0
        %211 = vmatpush.bf16.msra.mxu0 0
        %212 = vmatpush.bf16.msra.mxu0 0
        %213 = vmatpush.bf16.msra.mxu0 0
        %214 = vmatpush.bf16.msra.mxu0 0
        %215 = vmatpush.bf16.msra.mxu0 0
        %216 = vmatpush.bf16.msra.mxu0 0
        %217 = vmatpush.bf16.msra.mxu0 %v204
        %218 = vmatpush.bf16.msra.mxu0 %v203
        %219 = vmatmul.bf16.gmra.mxu0 %v209
        %v220 = vpop.f32.mrf.mxu0
        %v221 = vadd.f32 0.0, %v220
        %v222 = vpop.f32.mrf.mxu0
        %v223 = vadd.f32 0.0, %v222
        %224 = vdwg.mxu0
        %225 = vst [vmem:[%s180] sm:$0xff] %v221
        %226 = vst [vmem:[%s180 + $0x8] sm:$0xff] %v223
        %s227 = sand.u32 %s75, 1
        %s228 = scalar_lea.sflag [#allocation4], %s227
        %s229 = sand.u32 %s75, 1
        %s230 = smul.addr %s229, 16
        %s231 = scalar_lea.vmem [#allocation7], %s230
        // Predicated region
        $region37: #{tpu_custom_call.1} parent=27 // pred_check
          %p232 = pneg %p85
        $region38: #{tpu_custom_call.1} parent=27 // pred_check_branch
          %234 = sbr.rel (%p232) target = $region40
        $region39: #{tpu_custom_call.1} parent=27 // pred_region
          %s235 = smul.u32 2, %s20
          %237 = vsyncadd %s228, 0
          %s238 = smul.addr %s235, 8
          %s239 = scalar_lea.hbm %s2, %s238
          %s240 = sshll.u32 %s231, 4
          %s241 = int_to_ptr.vmem [resolvable:$true] %s240
          %s242 = sshll.u32 %s239, 4
          %s243 = int_to_ptr.hbm [resolvable:$true] %s242
          %248 = dma.vmem_to_hbm [thread:$0]  %s241, 256, %s243, %s228, 128, 128, 8
        $region40: #{tpu_custom_call.1} parent=27 // pred_fallthru
          _
      $region28: #{tpu_custom_call.1} parent=5 // pred_fallthru
        _
      %p249 = scmp.le.s32.totalorder 2, %s15
      // Predicated region
      $region41: #{tpu_custom_call.1} parent=5 // pred_check
        %p250 = pneg %p249
      $region42: #{tpu_custom_call.1} parent=5 // pred_check_branch
        %252 = sbr.rel (%p250) target = $region44
      $region43: #{tpu_custom_call.1} parent=5 // pred_region
        %s253 = ssub.s32 %s15, 2
        // Predicated region
        $region45: #{tpu_custom_call.1} parent=43 // pred_check
          %p254 = pneg %p91
        $region46: #{tpu_custom_call.1} parent=43 // pred_check_branch
          %256 = sbr.rel (%p254) target = $region48
        $region47: #{tpu_custom_call.1} parent=43 // pred_region
          %s257 = sand.u32 %s76, 1
          %s258 = scalar_lea.sflag [#allocation4], %s257
          %s259 = sand.u32 %s76, 1
          %s260 = smul.addr %s259, 16
          %s261 = scalar_lea.vmem [#allocation7], %s260
          %263 = dma.done %s258, 256
        $region48: #{tpu_custom_call.1} parent=43 // pred_fallthru
          _
      $region44: #{tpu_custom_call.1} parent=5 // pred_fallthru
        _
    $region6: #{tpu_custom_call.1} parent=1 // loop_footer
      %s19 = sadd.s32 1, %s15
    $region7: #{tpu_custom_call.1} parent=1 // loop_footer_branch
      %14 = sbr.rel target = $region3
    $region8: #{tpu_custom_call.1} parent=1 // loop_exit
      _
    %264 = vsyncpa [#allocation3], 1
    %s265 = scalar_lea.sflag [#allocation3], 1
    %266 = vsyncpa %s265, 1
    %267 = vsyncpa [#allocation6], 1
    %268 = vsyncpa [#allocation4], 1
    %s269 = scalar_lea.sflag [#allocation4], 1
    %270 = vsyncpa %s269, 1

</llo_original>
